<compile_context>
chip_gen: v7x
topology: tpu7x:2x2x1
jax: 0.10.0
libtpu: 0.0.40
codegen_flags: <defaults>
</compile_context>

<pallas_src>
import functools

import jax
import jax.numpy as jnp
from jax.experimental import pallas as pl
from jax.experimental.pallas import tpu as pltpu

LANE = 128
MAX_BLOCK_ROWS = 1024   # 1024 x 128 f32 = 512 KiB per input tile


def _round_up(x, m):
    return ((x + m - 1) // m) * m


def _dice_focal_sums_kernel(a_ref, b_ref, out_ref, acc_ref, *,
                            n_elems, blocks_per_core, block_rows):
    p = pl.program_id(0)          # parallel (core) axis
    i = pl.program_id(1)          # reduction axis
    block_elems = block_rows * LANE

    @pl.when(i == 0)
    def _():
        acc_ref[...] = jnp.zeros_like(acc_ref)

    a = a_ref[...]                # DiceFocalLoss `inputs`  (logits)
    b = b_ref[...]                # DiceFocalLoss `targets`

    sig_b = jax.nn.sigmoid(b)     # DiceLoss sigmoids its 2nd arg (= targets)

    # BCE(sigmoid(a), b) in logits form, with torch's log clamp at -100:
    #   log(sigmoid(a))     = min(a, 0)  - log(1 + exp(-|a|))
    #   log(1 - sigmoid(a)) = min(-a, 0) - log(1 + exp(-|a|))
    sp = jnp.log(1.0 + jnp.exp(-jnp.abs(a)))
    log_p = jnp.maximum(jnp.minimum(a, 0.0) - sp, -100.0)
    log_1mp = jnp.maximum(jnp.minimum(-a, 0.0) - sp, -100.0)
    bce_el = -(b * log_p + (1.0 - b) * log_1mp)

    def _pre_reduce(x):
        # (block_rows, 128) -> (8, 128): sublane-block-wise VALU adds only.
        return jnp.sum(x.reshape(-1, 8, LANE), axis=0)

    def _accumulate(mask):
        if mask is None:
            t0, t1, t2, t3 = sig_b * a, sig_b, a, bce_el
        else:
            zero = jnp.zeros_like(a)
            t0 = jnp.where(mask, sig_b * a, zero)
            t1 = jnp.where(mask, sig_b, zero)
            t2 = jnp.where(mask, a, zero)
            t3 = jnp.where(mask, bce_el, zero)
        acc_ref[0] += _pre_reduce(t0)   # intersection: sigmoid(targets)*inputs
        acc_ref[1] += _pre_reduce(t1)   # sum(sigmoid(targets))
        acc_ref[2] += _pre_reduce(t2)   # sum(inputs)
        acc_ref[3] += _pre_reduce(t3)   # sum of elementwise BCE

    gstart = (p * blocks_per_core + i) * block_elems   # global element offset

    @pl.when(gstart + block_elems <= n_elems)          # full (unpadded) block
    def _():
        _accumulate(None)

    @pl.when(gstart + block_elems > n_elems)           # tail block: mask padding
    def _():
        row = jax.lax.broadcasted_iota(jnp.int32, (block_rows, LANE), 0)
        lane = jax.lax.broadcasted_iota(jnp.int32, (block_rows, LANE), 1)
        gidx = gstart + row * LANE + lane
        _accumulate(gidx < n_elems)

    @pl.when(i == pl.num_programs(1) - 1)
    def _():
        out_ref[0] = acc_ref[...]


def dice_focal_loss(inputs, targets, smooth=1.0, alpha=2.0, gamma=0.8):
    a = inputs.reshape(-1).astype(jnp.float32)
    b = targets.reshape(-1).astype(jnp.float32)
    n = a.shape[0]   # assumed < 2**31 (int32 index math in the kernel)

    rows_needed = pl.cdiv(n, LANE)
    block_rows = min(MAX_BLOCK_ROWS, _round_up(rows_needed, 8))
    block_elems = block_rows * LANE
    num_blocks = pl.cdiv(n, block_elems)

    # Split the streaming reduction across two cores when there is enough work
    # (v7x dual-TC / megacore); each core owns `blocks_per_core` blocks.
    num_cores = 2 if num_blocks >= 2 else 1
    blocks_per_core = pl.cdiv(num_blocks, num_cores)
    total_blocks = num_cores * blocks_per_core

    padded = total_blocks * block_elems
    pad = padded - n
    if pad:
        # Only taken when n is not a multiple of the block granule; the padded
        # tail is masked out inside the kernel.
        a = jnp.pad(a, (0, pad))
        b = jnp.pad(b, (0, pad))
    a2 = a.reshape(total_blocks * block_rows, LANE)
    b2 = b.reshape(total_blocks * block_rows, LANE)

    kernel = functools.partial(
        _dice_focal_sums_kernel,
        n_elems=n, blocks_per_core=blocks_per_core, block_rows=block_rows)

    tile_spec = pl.BlockSpec(
        (block_rows, LANE), lambda p, i: (p * blocks_per_core + i, 0))

    partial_sums = pl.pallas_call(
        kernel,
        out_shape=jax.ShapeDtypeStruct((num_cores, 4, 8, LANE), jnp.float32),
        grid_spec=pltpu.PrefetchScalarGridSpec(
            num_scalar_prefetch=0,
            grid=(num_cores, blocks_per_core),
            in_specs=[tile_spec, tile_spec],
            out_specs=pl.BlockSpec((1, 4, 8, LANE), lambda p, i: (p, 0, 0, 0)),
            scratch_shapes=[pltpu.VMEM((4, 8, LANE), jnp.float32)],
        ),
        compiler_params=pltpu.CompilerParams(
            dimension_semantics=("parallel", "arbitrary")),
    )(a2, b2)

    sums = jnp.sum(partial_sums, axis=(0, 2, 3))   # (4,)
    inter, s_sigb, s_a, s_bce = sums[0], sums[1], sums[2], sums[3]

    dice = (2.0 * inter + smooth) / (s_sigb + s_a + smooth)
    dice_loss = 1.0 - dice

    bce = s_bce / n
    focal = alpha * (1.0 - jnp.exp(-bce)) ** gamma * bce
    return dice_loss + focal


def _reference_loss(inputs, targets, smooth=1.0, alpha=2.0, gamma=0.8):
    a = inputs.reshape(-1).astype(jnp.float32)
    b = targets.reshape(-1).astype(jnp.float32)
    sig_b = jax.nn.sigmoid(b)
    sig_a = jax.nn.sigmoid(a)
    inter = jnp.sum(sig_b * a)
    dice = (2.0 * inter + smooth) / (jnp.sum(sig_b) + jnp.sum(a) + smooth)
    bce = jnp.mean(-(b * jnp.maximum(jnp.log(sig_a), -100.0)
                     + (1.0 - b) * jnp.maximum(jnp.log(1.0 - sig_a), -100.0)))
    focal = alpha * (1.0 - jnp.exp(-bce)) ** gamma * bce
    return (1.0 - dice) + focal


if __name__ == "__main__":
    key = jax.random.PRNGKey(0)
    k1, k2, k3, k4 = jax.random.split(key, 4)

    # Primary small test: NCHW logits + binary masks, as the PyTorch module
    # would receive.  n = 2048 -> single block, no padding, no pad copy.
    inputs = jax.random.normal(k1, (2, 4, 16, 16), dtype=jnp.float32)
    targets = (jax.random.uniform(k2, (2, 4, 16, 16)) > 0.5).astype(jnp.float32)

    loss = jax.block_until_ready(dice_focal_loss(inputs, targets))
    ref = jax.block_until_ready(_reference_loss(inputs, targets))
    assert jnp.allclose(loss, ref, atol=1e-5, rtol=1e-5), (loss, ref)

    # Secondary test: multi-block + two-way parallel split + ragged tail mask.
    inputs2 = jax.random.normal(k3, (2, 8, 128, 66), dtype=jnp.float32)
    targets2 = (jax.random.uniform(k4, (2, 8, 128, 66)) > 0.5).astype(jnp.float32)

    loss2 = jax.block_until_ready(dice_focal_loss(inputs2, targets2))
    ref2 = jax.block_until_ready(_reference_loss(inputs2, targets2))
    assert jnp.allclose(loss2, ref2, atol=1e-4, rtol=1e-4), (loss2, ref2)

    print("KERNEL_OK")
</pallas_src>

<mosaic_0001>
module attributes {stable_mosaic.version = 11 : i64} {
  func.func @_dice_focal_sums_kernel(%arg0: i32, %arg1: i32, %arg2: memref<16x128xf32, #tpu.memory_space<vmem>>, %arg3: memref<16x128xf32, #tpu.memory_space<vmem>>, %arg4: memref<1x4x8x128xf32, #tpu.memory_space<vmem>>, %arg5: memref<4x8x128xf32, #tpu.memory_space<vmem>>) attributes {dimension_semantics = [#tpu.dimension_semantics<parallel>, #tpu.dimension_semantics<arbitrary>], iteration_bounds = array<i64: 1, 1>, scalar_prefetch = 0 : i64, scratch_operands = 1 : i64, tpu.core_type = #tpu.core_type<tc>, window_params = [{transform_indices = @transform_0, window_bounds = array<i64: 16, 128>}, {transform_indices = @transform_1, window_bounds = array<i64: 16, 128>}, {transform_indices = @transform_2, window_bounds = array<i64: 1, 4, 8, 128>}]} {
    %c0_i32 = arith.constant 0 : i32
    %0 = arith.cmpi eq, %arg1, %c0_i32 : i32
    %1 = arith.extui %0 : i1 to i32
    %c0_i32_0 = arith.constant 0 : i32
    %2 = arith.cmpi ne, %1, %c0_i32_0 : i32
    scf.if %2 {
      %cst_21 = arith.constant 0.000000e+00 : f32
      %50 = vector.broadcast %cst_21 : f32 to vector<4x8x128xf32>
      %c0_22 = arith.constant 0 : index
      %c0_23 = arith.constant 0 : index
      %c0_24 = arith.constant 0 : index
      %51 = vector.load %arg5[%c0_22, %c0_23, %c0_24] : memref<4x8x128xf32, #tpu.memory_space<vmem>>, vector<4x8x128xf32>
      tpu.vector_store %arg5[%c0_22, %c0_23, %c0_24], %50 {strides = array<i32>} : memref<4x8x128xf32, #tpu.memory_space<vmem>>, vector<4x8x128xf32>,
    } else {
    }
    %c0 = arith.constant 0 : index
    %c0_1 = arith.constant 0 : index
    %3 = vector.load %arg2[%c0, %c0_1] : memref<16x128xf32, #tpu.memory_space<vmem>>, vector<16x128xf32>
    %c0_2 = arith.constant 0 : index
    %c0_3 = arith.constant 0 : index
    %4 = vector.load %arg3[%c0_2, %c0_3] : memref<16x128xf32, #tpu.memory_space<vmem>>, vector<16x128xf32>
    %5 = arith.negf %4 : vector<16x128xf32>
    %6 = math.exp %5 : vector<16x128xf32>
    %cst = arith.constant 1.000000e+00 : f32
    %7 = vector.broadcast %cst : f32 to vector<16x128xf32>
    %8 = arith.addf %7, %6 : vector<16x128xf32>
    %9 = arith.divf %7, %8 : vector<16x128xf32>
    %10 = math.absf %3 : vector<16x128xf32>
    %cst_4 = arith.constant 0.000000e+00 : f32
    %11 = vector.broadcast %cst_4 : f32 to vector<16x128xf32>
    %12 = arith.subf %11, %10 : vector<16x128xf32>
    %13 = math.exp %12 : vector<16x128xf32>
    %cst_5 = arith.constant 1.000000e+00 : f32
    %14 = vector.broadcast %cst_5 : f32 to vector<16x128xf32>
    %15 = arith.addf %14, %13 : vector<16x128xf32>
    %16 = math.log %15 : vector<16x128xf32>
    %cst_6 = arith.constant 0.000000e+00 : f32
    %17 = vector.broadcast %cst_6 : f32 to vector<16x128xf32>
    %18 = arith.minimumf %3, %17 : vector<16x128xf32>
    %19 = arith.subf %18, %16 : vector<16x128xf32>
    %cst_7 = arith.constant -1.000000e+02 : f32
    %20 = vector.broadcast %cst_7 : f32 to vector<16x128xf32>
    %21 = arith.maximumf %19, %20 : vector<16x128xf32>
    %cst_8 = arith.constant 0.000000e+00 : f32
    %22 = vector.broadcast %cst_8 : f32 to vector<16x128xf32>
    %23 = arith.subf %22, %3 : vector<16x128xf32>
    %cst_9 = arith.constant 0.000000e+00 : f32
    %24 = vector.broadcast %cst_9 : f32 to vector<16x128xf32>
    %25 = arith.minimumf %23, %24 : vector<16x128xf32>
    %26 = arith.subf %25, %16 : vector<16x128xf32>
    %cst_10 = arith.constant -1.000000e+02 : f32
    %27 = vector.broadcast %cst_10 : f32 to vector<16x128xf32>
    %28 = arith.maximumf %26, %27 : vector<16x128xf32>
    %29 = arith.mulf %4, %21 : vector<16x128xf32>
    %cst_11 = arith.constant 1.000000e+00 : f32
    %30 = vector.broadcast %cst_11 : f32 to vector<16x128xf32>
    %31 = arith.subf %30, %4 : vector<16x128xf32>
    %32 = arith.mulf %31, %28 : vector<16x128xf32>
    %33 = arith.addf %29, %32 : vector<16x128xf32>
    %cst_12 = arith.constant 0.000000e+00 : f32
    %34 = vector.broadcast %cst_12 : f32 to vector<16x128xf32>
    %35 = arith.subf %34, %33 : vector<16x128xf32>
    %c1_i32 = arith.constant 1 : i32
    %36 = arith.muli %arg0, %c1_i32 : i32
    %37 = arith.addi %36, %arg1 : i32
    %c2048_i32 = arith.constant 2048 : i32
    %38 = arith.muli %37, %c2048_i32 : i32
    %c2048_i32_13 = arith.constant 2048 : i32
    %39 = arith.addi %38, %c2048_i32_13 : i32
    %c2048_i32_14 = arith.constant 2048 : i32
    %40 = arith.cmpi sle, %39, %c2048_i32_14 : i32
    %41 = arith.extui %40 : i1 to i32
    %c0_i32_15 = arith.constant 0 : i32
    %42 = arith.cmpi ne, %41, %c0_i32_15 : i32
    scf.if %42 {
      %50 = arith.mulf %9, %3 : vector<16x128xf32>
      %c0_21 = arith.constant 0 : index
      %c0_22 = arith.constant 0 : index
      %c0_23 = arith.constant 0 : index
      %51 = vector.load %arg5[%c0_21, %c0_22, %c0_23] : memref<4x8x128xf32, #tpu.memory_space<vmem>>, vector<1x8x128xf32>
      %52 = vector.shape_cast %51 : vector<1x8x128xf32> to vector<8x128xf32>
      %53 = vector.shape_cast %50 : vector<16x128xf32> to vector<2x8x128xf32>
      %cst_24 = arith.constant dense<0.000000e+00> : vector<8x128xf32>
      %54 = vector.multi_reduction <add>, %53, %cst_24 [0] : vector<2x8x128xf32> to vector<8x128xf32>
      %55 = arith.addf %52, %54 : vector<8x128xf32>
      %c0_25 = arith.constant 0 : index
      %c0_26 = arith.constant 0 : index
      %c0_27 = arith.constant 0 : index
      %56 = vector.load %arg5[%c0_25, %c0_26, %c0_27] : memref<4x8x128xf32, #tpu.memory_space<vmem>>, vector<1x8x128xf32>
      %57 = vector.shape_cast %56 : vector<1x8x128xf32> to vector<8x128xf32>
      %58 = vector.shape_cast %55 : vector<8x128xf32> to vector<1x8x128xf32>
      tpu.vector_store %arg5[%c0_25, %c0_26, %c0_27], %58 {strides = array<i32>} : memref<4x8x128xf32, #tpu.memory_space<vmem>>, vector<1x8x128xf32>,
      %c1 = arith.constant 1 : index
      %c0_28 = arith.constant 0 : index
      %c0_29 = arith.constant 0 : index
      %59 = vector.load %arg5[%c1, %c0_28, %c0_29] : memref<4x8x128xf32, #tpu.memory_space<vmem>>, vector<1x8x128xf32>
      %60 = vector.shape_cast %59 : vector<1x8x128xf32> to vector<8x128xf32>
      %61 = vector.shape_cast %9 : vector<16x128xf32> to vector<2x8x128xf32>
      %cst_30 = arith.constant dense<0.000000e+00> : vector<8x128xf32>
      %62 = vector.multi_reduction <add>, %61, %cst_30 [0] : vector<2x8x128xf32> to vector<8x128xf32>
      %63 = arith.addf %60, %62 : vector<8x128xf32>
      %c1_31 = arith.constant 1 : index
      %c0_32 = arith.constant 0 : index
      %c0_33 = arith.constant 0 : index
      %64 = vector.load %arg5[%c1_31, %c0_32, %c0_33] : memref<4x8x128xf32, #tpu.memory_space<vmem>>, vector<1x8x128xf32>
      %65 = vector.shape_cast %64 : vector<1x8x128xf32> to vector<8x128xf32>
      %66 = vector.shape_cast %63 : vector<8x128xf32> to vector<1x8x128xf32>
      tpu.vector_store %arg5[%c1_31, %c0_32, %c0_33], %66 {strides = array<i32>} : memref<4x8x128xf32, #tpu.memory_space<vmem>>, vector<1x8x128xf32>,
      %c2 = arith.constant 2 : index
      %c0_34 = arith.constant 0 : index
      %c0_35 = arith.constant 0 : index
      %67 = vector.load %arg5[%c2, %c0_34, %c0_35] : memref<4x8x128xf32, #tpu.memory_space<vmem>>, vector<1x8x128xf32>
      %68 = vector.shape_cast %67 : vector<1x8x128xf32> to vector<8x128xf32>
      %69 = vector.shape_cast %3 : vector<16x128xf32> to vector<2x8x128xf32>
      %cst_36 = arith.constant dense<0.000000e+00> : vector<8x128xf32>
      %70 = vector.multi_reduction <add>, %69, %cst_36 [0] : vector<2x8x128xf32> to vector<8x128xf32>
      %71 = arith.addf %68, %70 : vector<8x128xf32>
      %c2_37 = arith.constant 2 : index
      %c0_38 = arith.constant 0 : index
      %c0_39 = arith.constant 0 : index
      %72 = vector.load %arg5[%c2_37, %c0_38, %c0_39] : memref<4x8x128xf32, #tpu.memory_space<vmem>>, vector<1x8x128xf32>
      %73 = vector.shape_cast %72 : vector<1x8x128xf32> to vector<8x128xf32>
      %74 = vector.shape_cast %71 : vector<8x128xf32> to vector<1x8x128xf32>
      tpu.vector_store %arg5[%c2_37, %c0_38, %c0_39], %74 {strides = array<i32>} : memref<4x8x128xf32, #tpu.memory_space<vmem>>, vector<1x8x128xf32>,
      %c3 = arith.constant 3 : index
      %c0_40 = arith.constant 0 : index
      %c0_41 = arith.constant 0 : index
      %75 = vector.load %arg5[%c3, %c0_40, %c0_41] : memref<4x8x128xf32, #tpu.memory_space<vmem>>, vector<1x8x128xf32>
      %76 = vector.shape_cast %75 : vector<1x8x128xf32> to vector<8x128xf32>
      %77 = vector.shape_cast %35 : vector<16x128xf32> to vector<2x8x128xf32>
      %cst_42 = arith.constant dense<0.000000e+00> : vector<8x128xf32>
      %78 = vector.multi_reduction <add>, %77, %cst_42 [0] : vector<2x8x128xf32> to vector<8x128xf32>
      %79 = arith.addf %76, %78 : vector<8x128xf32>
      %c3_43 = arith.constant 3 : index
      %c0_44 = arith.constant 0 : index
      %c0_45 = arith.constant 0 : index
      %80 = vector.load %arg5[%c3_43, %c0_44, %c0_45] : memref<4x8x128xf32, #tpu.memory_space<vmem>>, vector<1x8x128xf32>
      %81 = vector.shape_cast %80 : vector<1x8x128xf32> to vector<8x128xf32>
      %82 = vector.shape_cast %79 : vector<8x128xf32> to vector<1x8x128xf32>
      tpu.vector_store %arg5[%c3_43, %c0_44, %c0_45], %82 {strides = array<i32>} : memref<4x8x128xf32, #tpu.memory_space<vmem>>, vector<1x8x128xf32>,
    } else {
    }
    %c2048_i32_16 = arith.constant 2048 : i32
    %43 = arith.addi %38, %c2048_i32_16 : i32
    %c2048_i32_17 = arith.constant 2048 : i32
    %44 = arith.cmpi sgt, %43, %c2048_i32_17 : i32
    %45 = arith.extui %44 : i1 to i32
    %c0_i32_18 = arith.constant 0 : i32
    %46 = arith.cmpi ne, %45, %c0_i32_18 : i32
    scf.if %46 {
      %50 = tpu.iota {dimensions = array<i32: 0>} : vector<16x128xi32>
      %51 = tpu.iota {dimensions = array<i32: 1>} : vector<16x128xi32>
      %c128_i32 = arith.constant 128 : i32
      %52 = vector.broadcast %c128_i32 : i32 to vector<16x128xi32>
      %53 = arith.muli %50, %52 : vector<16x128xi32>
      %54 = vector.broadcast %38 : i32 to vector<16x128xi32>
      %55 = arith.addi %54, %53 : vector<16x128xi32>
      %56 = arith.addi %55, %51 : vector<16x128xi32>
      %c2048_i32_21 = arith.constant 2048 : i32
      %57 = vector.broadcast %c2048_i32_21 : i32 to vector<16x128xi32>
      %58 = arith.cmpi slt, %56, %57 : vector<16x128xi32>
      %cst_22 = arith.constant 0.000000e+00 : f32
      %59 = vector.broadcast %cst_22 : f32 to vector<16x128xf32>
      %60 = arith.mulf %9, %3 : vector<16x128xf32>
      %61 = arith.select %58, %60, %59 : vector<16x128xi1>, vector<16x128xf32>
      %62 = arith.select %58, %9, %59 : vector<16x128xi1>, vector<16x128xf32>
      %63 = arith.select %58, %3, %59 : vector<16x128xi1>, vector<16x128xf32>
      %64 = arith.select %58, %35, %59 : vector<16x128xi1>, vector<16x128xf32>
      %c0_23 = arith.constant 0 : index
      %c0_24 = arith.constant 0 : index
      %c0_25 = arith.constant 0 : index
      %65 = vector.load %arg5[%c0_23, %c0_24, %c0_25] : memref<4x8x128xf32, #tpu.memory_space<vmem>>, vector<1x8x128xf32>
      %66 = vector.shape_cast %65 : vector<1x8x128xf32> to vector<8x128xf32>
      %67 = vector.shape_cast %61 : vector<16x128xf32> to vector<2x8x128xf32>
      %cst_26 = arith.constant dense<0.000000e+00> : vector<8x128xf32>
      %68 = vector.multi_reduction <add>, %67, %cst_26 [0] : vector<2x8x128xf32> to vector<8x128xf32>
      %69 = arith.addf %66, %68 : vector<8x128xf32>
      %c0_27 = arith.constant 0 : index
      %c0_28 = arith.constant 0 : index
      %c0_29 = arith.constant 0 : index
      %70 = vector.load %arg5[%c0_27, %c0_28, %c0_29] : memref<4x8x128xf32, #tpu.memory_space<vmem>>, vector<1x8x128xf32>
      %71 = vector.shape_cast %70 : vector<1x8x128xf32> to vector<8x128xf32>
      %72 = vector.shape_cast %69 : vector<8x128xf32> to vector<1x8x128xf32>
      tpu.vector_store %arg5[%c0_27, %c0_28, %c0_29], %72 {strides = array<i32>} : memref<4x8x128xf32, #tpu.memory_space<vmem>>, vector<1x8x128xf32>,
      %c1 = arith.constant 1 : index
      %c0_30 = arith.constant 0 : index
      %c0_31 = arith.constant 0 : index
      %73 = vector.load %arg5[%c1, %c0_30, %c0_31] : memref<4x8x128xf32, #tpu.memory_space<vmem>>, vector<1x8x128xf32>
      %74 = vector.shape_cast %73 : vector<1x8x128xf32> to vector<8x128xf32>
      %75 = vector.shape_cast %62 : vector<16x128xf32> to vector<2x8x128xf32>
      %cst_32 = arith.constant dense<0.000000e+00> : vector<8x128xf32>
      %76 = vector.multi_reduction <add>, %75, %cst_32 [0] : vector<2x8x128xf32> to vector<8x128xf32>
      %77 = arith.addf %74, %76 : vector<8x128xf32>
      %c1_33 = arith.constant 1 : index
      %c0_34 = arith.constant 0 : index
      %c0_35 = arith.constant 0 : index
      %78 = vector.load %arg5[%c1_33, %c0_34, %c0_35] : memref<4x8x128xf32, #tpu.memory_space<vmem>>, vector<1x8x128xf32>
      %79 = vector.shape_cast %78 : vector<1x8x128xf32> to vector<8x128xf32>
      %80 = vector.shape_cast %77 : vector<8x128xf32> to vector<1x8x128xf32>
      tpu.vector_store %arg5[%c1_33, %c0_34, %c0_35], %80 {strides = array<i32>} : memref<4x8x128xf32, #tpu.memory_space<vmem>>, vector<1x8x128xf32>,
      %c2 = arith.constant 2 : index
      %c0_36 = arith.constant 0 : index
      %c0_37 = arith.constant 0 : index
      %81 = vector.load %arg5[%c2, %c0_36, %c0_37] : memref<4x8x128xf32, #tpu.memory_space<vmem>>, vector<1x8x128xf32>
      %82 = vector.shape_cast %81 : vector<1x8x128xf32> to vector<8x128xf32>
      %83 = vector.shape_cast %63 : vector<16x128xf32> to vector<2x8x128xf32>
      %cst_38 = arith.constant dense<0.000000e+00> : vector<8x128xf32>
      %84 = vector.multi_reduction <add>, %83, %cst_38 [0] : vector<2x8x128xf32> to vector<8x128xf32>
      %85 = arith.addf %82, %84 : vector<8x128xf32>
      %c2_39 = arith.constant 2 : index
      %c0_40 = arith.constant 0 : index
      %c0_41 = arith.constant 0 : index
      %86 = vector.load %arg5[%c2_39, %c0_40, %c0_41] : memref<4x8x128xf32, #tpu.memory_space<vmem>>, vector<1x8x128xf32>
      %87 = vector.shape_cast %86 : vector<1x8x128xf32> to vector<8x128xf32>
      %88 = vector.shape_cast %85 : vector<8x128xf32> to vector<1x8x128xf32>
      tpu.vector_store %arg5[%c2_39, %c0_40, %c0_41], %88 {strides = array<i32>} : memref<4x8x128xf32, #tpu.memory_space<vmem>>, vector<1x8x128xf32>,
      %c3 = arith.constant 3 : index
      %c0_42 = arith.constant 0 : index
      %c0_43 = arith.constant 0 : index
      %89 = vector.load %arg5[%c3, %c0_42, %c0_43] : memref<4x8x128xf32, #tpu.memory_space<vmem>>, vector<1x8x128xf32>
      %90 = vector.shape_cast %89 : vector<1x8x128xf32> to vector<8x128xf32>
      %91 = vector.shape_cast %64 : vector<16x128xf32> to vector<2x8x128xf32>
      %cst_44 = arith.constant dense<0.000000e+00> : vector<8x128xf32>
      %92 = vector.multi_reduction <add>, %91, %cst_44 [0] : vector<2x8x128xf32> to vector<8x128xf32>
      %93 = arith.addf %90, %92 : vector<8x128xf32>
      %c3_45 = arith.constant 3 : index
      %c0_46 = arith.constant 0 : index
      %c0_47 = arith.constant 0 : index
      %94 = vector.load %arg5[%c3_45, %c0_46, %c0_47] : memref<4x8x128xf32, #tpu.memory_space<vmem>>, vector<1x8x128xf32>
      %95 = vector.shape_cast %94 : vector<1x8x128xf32> to vector<8x128xf32>
      %96 = vector.shape_cast %93 : vector<8x128xf32> to vector<1x8x128xf32>
      tpu.vector_store %arg5[%c3_45, %c0_46, %c0_47], %96 {strides = array<i32>} : memref<4x8x128xf32, #tpu.memory_space<vmem>>, vector<1x8x128xf32>,
    } else {
    }
    %c0_i32_19 = arith.constant 0 : i32
    %47 = arith.cmpi eq, %arg1, %c0_i32_19 : i32
    %48 = arith.extui %47 : i1 to i32
    %c0_i32_20 = arith.constant 0 : i32
    %49 = arith.cmpi ne, %48, %c0_i32_20 : i32
    scf.if %49 {
      %c0_21 = arith.constant 0 : index
      %c0_22 = arith.constant 0 : index
      %c0_23 = arith.constant 0 : index
      %50 = vector.load %arg5[%c0_21, %c0_22, %c0_23] : memref<4x8x128xf32, #tpu.memory_space<vmem>>, vector<4x8x128xf32>
      %c0_24 = arith.constant 0 : index
      %c0_25 = arith.constant 0 : index
      %c0_26 = arith.constant 0 : index
      %c0_27 = arith.constant 0 : index
      %51 = vector.load %arg4[%c0_24, %c0_25, %c0_26, %c0_27] : memref<1x4x8x128xf32, #tpu.memory_space<vmem>>, vector<1x4x8x128xf32>
      %52 = vector.shape_cast %51 : vector<1x4x8x128xf32> to vector<4x8x128xf32>
      %53 = vector.shape_cast %50 : vector<4x8x128xf32> to vector<1x4x8x128xf32>
      tpu.vector_store %arg4[%c0_24, %c0_25, %c0_26, %c0_27], %53 {strides = array<i32>} : memref<1x4x8x128xf32, #tpu.memory_space<vmem>>, vector<1x4x8x128xf32>,
    } else {
    }
    return
  }
  func.func @transform_0(%arg0: i32, %arg1: i32) -> (i32, i32) {
    %c1_i32 = arith.constant 1 : i32
    %0 = arith.muli %arg0, %c1_i32 : i32
    %1 = arith.addi %0, %arg1 : i32
    %c0_i32 = arith.constant 0 : i32
    %c0_i32_0 = arith.constant 0 : i32
    return %1, %c0_i32 : i32, i32
  }
  func.func @transform_1(%arg0: i32, %arg1: i32) -> (i32, i32) {
    %c1_i32 = arith.constant 1 : i32
    %0 = arith.muli %arg0, %c1_i32 : i32
    %1 = arith.addi %0, %arg1 : i32
    %c0_i32 = arith.constant 0 : i32
    %c0_i32_0 = arith.constant 0 : i32
    return %1, %c0_i32 : i32, i32
  }
  func.func @transform_2(%arg0: i32, %arg1: i32) -> (i32, i32, i32, i32) {
    %c0_i32 = arith.constant 0 : i32
    %c0_i32_0 = arith.constant 0 : i32
    %c0_i32_1 = arith.constant 0 : i32
    %c0_i32_2 = arith.constant 0 : i32
    return %arg0, %c0_i32, %c0_i32_0, %c0_i32_1 : i32, i32, i32, i32
  }
}

</mosaic_0001>

<llo_original>
// kernel: tpu_custom_call.1
$region0: #{tpu_custom_call.1}
  #allocation0 [shape = 'u32[]', space=smem, size = 0x4, offset = 0x4, fixed_abs, tag = 'smem constant byte address 0x4 - core index']
  #allocation1 [shape = 'u32[144,128]{1,0:T(1,128)}', space=vmem, size = 0x12000, scoped, tag = 'internal scratch']
  #allocation2 [shape = 'f32[4,8,128]{2,1,0:T(8,128)}', space=vmem, size = 0x4000, scoped, tag = 'scratch operand']
  %s0 = inlined_call_operand.hbm [shape: f32[16,128], index: 0, kind: input, shape index: {}]
  %s1 = inlined_call_operand.hbm [shape: f32[16,128], index: 1, kind: input, shape index: {}]
  %s2 = inlined_call_operand.hbm [shape: f32[1,4,8,128], index: 2, kind: output, shape index: {}]
  %s3 = sld [smem:[#allocation0]]
  $region42: #{tpu_custom_call.1} parent=0
    _
  %s5 = ssub.s32 1, %s3
  %s6 = scalar_select 0, %s5, %s3
  $region1: #{tpu_custom_call.1} parent=0
    #allocation3 [shape = 'u8[8192]{0}', space=vmem, size = 0x2000, scoped, tag = 'input window, operand 0, single buffered']
    #allocation4 [shape = 's32[1]{0}', space=sflag, size = 0x4, scoped, tag = 'scoped memory for tpu_custom_call.1']
    #allocation5 [shape = 's32[1]{0}', space=sflag, size = 0x4, scoped, tag = 'scoped memory for tpu_custom_call.1']
    #allocation6 [shape = 'u8[8192]{0}', space=vmem, size = 0x2000, scoped, tag = 'input window, operand 1, single buffered']
    #allocation7 [shape = 's32[1]{0}', space=sflag, size = 0x4, scoped, tag = 'scoped memory for tpu_custom_call.1']
    #allocation8 [shape = 'u8[16384]{0}', space=vmem, size = 0x4000, scoped, tag = 'output window, operand 0, single buffered']
    %7 = vsyncpa [#allocation4], 0
    %8 = vsyncpa [#allocation7], 0
    %9 = vsyncpa [#allocation5], 0
    // Predicated region
    $region2: #{tpu_custom_call.1} parent=1 // pred_check
      _
    $region3: #{tpu_custom_call.1} parent=1 // pred_check_branch
      %11 = sbr.rel (0) target = $region5
    $region4: #{tpu_custom_call.1} parent=1 // pred_region
      %s12 = sadd.s32 0, 0
      %s13 = smul.u32 2, %s12
      %s15 = ssub.s32 256, 256
      %16 = vsyncadd [#allocation4], %s15
      %s17 = smul.addr %s13, 128
      %s18 = scalar_lea.hbm %s0, %s17
      %s19 = sshll.u32 [#allocation3], 4
      %s20 = int_to_ptr.vmem [resolvable:$true] %s19
      %25 = dma.hbm_to_vmem [thread:$0]  %s18, 256, %s20, [#allocation4], 128, 128, 8
    $region5: #{tpu_custom_call.1} parent=1 // pred_fallthru
      _
    // Predicated region
    $region6: #{tpu_custom_call.1} parent=1 // pred_check
      _
    $region7: #{tpu_custom_call.1} parent=1 // pred_check_branch
      %27 = sbr.rel (0) target = $region9
    $region8: #{tpu_custom_call.1} parent=1 // pred_region
      %s28 = sadd.s32 0, 0
      %s29 = smul.u32 2, %s28
      %s31 = ssub.s32 256, 256
      %32 = vsyncadd [#allocation7], %s31
      %s33 = smul.addr %s29, 128
      %s34 = scalar_lea.hbm %s1, %s33
      %s35 = sshll.u32 [#allocation6], 4
      %s36 = int_to_ptr.vmem [resolvable:$true] %s35
      %41 = dma.hbm_to_vmem [thread:$0]  %s34, 256, %s36, [#allocation7], 128, 128, 8
    $region9: #{tpu_custom_call.1} parent=1 // pred_fallthru
      _
    // Predicated region
    $region10: #{tpu_custom_call.1} parent=1 // pred_check
      _
    $region11: #{tpu_custom_call.1} parent=1 // pred_check_branch
      %43 = sbr.rel (0) target = $region13
    $region12: #{tpu_custom_call.1} parent=1 // pred_region
      %44 = dma.done [#allocation4], 256
    $region13: #{tpu_custom_call.1} parent=1 // pred_fallthru
      _
    // Predicated region
    $region14: #{tpu_custom_call.1} parent=1 // pred_check
      _
    $region15: #{tpu_custom_call.1} parent=1 // pred_check_branch
      %46 = sbr.rel (0) target = $region17
    $region16: #{tpu_custom_call.1} parent=1 // pred_region
      %47 = dma.done [#allocation7], 256
    $region17: #{tpu_custom_call.1} parent=1 // pred_fallthru
      _
    %s48 = sadd.s32 0, 0
    %s49 = smul.u32 2, %s48
    %s50 = sadd.s32 0, 0
    %s51 = smul.u32 2, %s50
    %p52 = scmp.eq.s32.totalorder 0, 0
    // Predicated region
    $region18: #{tpu_custom_call.1} parent=1 // pred_check
      %p53 = pneg %p52
    $region19: #{tpu_custom_call.1} parent=1 // pred_check_branch
      %55 = sbr.rel (%p53) target = $region21
    $region20: #{tpu_custom_call.1} parent=1 // pred_region
      %56 = vst [vmem:[#allocation2] sm:$0xff] 0.0
      %57 = vst [vmem:[#allocation2 + $0x8] sm:$0xff] 0.0
      %58 = vst [vmem:[#allocation2 + $0x10] sm:$0xff] 0.0
      %59 = vst [vmem:[#allocation2 + $0x18] sm:$0xff] 0.0
    $region21: #{tpu_custom_call.1} parent=1 // pred_fallthru
      _
    %v60 = vld [vmem:[#allocation3] sm:$0xff]
    %v61 = vld [vmem:[#allocation3 + $0x8] sm:$0xff]
    %v62 = vld [vmem:[#allocation6] sm:$0xff]
    %v63 = vld [vmem:[#allocation6 + $0x8] sm:$0xff]
    %v64 = vxor.u32 %v62, 2147483648
    %v65 = vxor.u32 %v63, 2147483648
    %v66 = vmul.f32 %v64, 1.442695
    %v67 = vpow.pop %v66
    %v68 = vmul.f32 %v65, 1.442695
    %v69 = vpow.pop %v68
    %v70 = vadd.f32 %v67, 1.0
    %v71 = vadd.f32 %v69, 1.0
    %v72 = vrcp.pop %v70
    %v73 = vmul.f32 1.0, %v72
    %v74 = vrcp.pop %v71
    %v75 = vmul.f32 1.0, %v74
    %v76 = vand.u32 2147483647, %v60
    %v77 = vand.u32 2147483647, %v61
    %v78 = vsub.f32 0.0, %v76
    %v79 = vsub.f32 0.0, %v77
    %v80 = vmul.f32 %v78, 1.442695
    %v81 = vpow.pop %v80
    %v82 = vmul.f32 %v79, 1.442695
    %v83 = vpow.pop %v82
    %v84 = vadd.f32 %v81, 1.0
    %v85 = vadd.f32 %v83, 1.0
    %v86 = vlog2.pop %v84
    %v87 = vmul.f32 %v86, 0.6931472
    %v88 = vlog2.pop %v85
    %v89 = vmul.f32 %v88, 0.6931472
    %v90 = vmin.f32 %v60, 0.0
    %v91 = vmin.f32 %v61, 0.0
    %v92 = vsub.f32 %v90, %v87
    %v93 = vsub.f32 %v91, %v89
    %v94 = vmax.f32 %v92, -100.0
    %v95 = vmax.f32 %v93, -100.0
    %v96 = vsub.f32 0.0, %v60
    %v97 = vsub.f32 0.0, %v61
    %v98 = vmin.f32 %v96, 0.0
    %v99 = vmin.f32 %v97, 0.0
    %v100 = vsub.f32 %v98, %v87
    %v101 = vsub.f32 %v99, %v89
    %v102 = vmax.f32 %v100, -100.0
    %v103 = vmax.f32 %v101, -100.0
    %v104 = vmul.f32 %v62, %v94
    %v105 = vmul.f32 %v63, %v95
    %v106 = vsub.f32 1.0, %v62
    %v107 = vsub.f32 1.0, %v63
    %v108 = vmul.f32 %v106, %v102
    %v109 = vmul.f32 %v107, %v103
    %v110 = vadd.f32 %v104, %v108
    %v111 = vadd.f32 %v105, %v109
    %v112 = vsub.f32 0.0, %v110
    %v113 = vsub.f32 0.0, %v111
    %s114 = sadd.s32 0, 0
    %s115 = smul.u32 %s114, 2048
    %s116 = sadd.s32 %s115, 2048
    %p117 = scmp.le.s32.totalorder %s116, 2048
    // Predicated region
    $region22: #{tpu_custom_call.1} parent=1 // pred_check
      %p118 = pneg %p117
    $region23: #{tpu_custom_call.1} parent=1 // pred_check_branch
      %120 = sbr.rel (%p118) target = $region25
    $region24: #{tpu_custom_call.1} parent=1 // pred_region
      %v121 = vmul.f32 %v73, %v60
      %v122 = vmul.f32 %v75, %v61
      %v123 = vld [vmem:[#allocation2] sm:$0xff]
      %v124 = vadd.f32 %v121, %v122
      %v125 = vadd.f32 %v123, %v124
      %126 = vst [vmem:[#allocation2] sm:$0xff] %v125
      %s127 = scalar_lea.vmem [#allocation2], 8
      %v128 = vld [vmem:[%s127] sm:$0xff]
      %v129 = vadd.f32 %v73, %v75
      %v130 = vadd.f32 %v128, %v129
      %131 = vst [vmem:[%s127] sm:$0xff] %v130
      %s132 = scalar_lea.vmem [#allocation2], 16
      %v133 = vld [vmem:[%s132] sm:$0xff]
      %v134 = vadd.f32 %v60, %v61
      %v135 = vadd.f32 %v133, %v134
      %136 = vst [vmem:[%s132] sm:$0xff] %v135
      %s137 = scalar_lea.vmem [#allocation2], 24
      %v138 = vld [vmem:[%s137] sm:$0xff]
      %v139 = vadd.f32 %v112, %v113
      %v140 = vadd.f32 %v138, %v139
      %141 = vst [vmem:[%s137] sm:$0xff] %v140
    $region25: #{tpu_custom_call.1} parent=1 // pred_fallthru
      _
    %p142 = scmp.gt.s32.totalorder %s116, 2048
    // Predicated region
    $region26: #{tpu_custom_call.1} parent=1 // pred_check
      %p143 = pneg %p142
    $region27: #{tpu_custom_call.1} parent=1 // pred_check_branch
      %145 = sbr.rel (%p143) target = $region29
    $region28: #{tpu_custom_call.1} parent=1 // pred_region
      %v146 = vlaneseq
      %v147 = vshrl.u32 %v146, 7
      %v148 = vadd.s32 %v147, 8
      %v149 = vlaneseq
      %v150 = vand.u32 %v149, 127
      %v151 = vmul.u32 %v147, 128
      %v152 = vmul.u32 %v148, 128
      %v153 = vstv %s115
      %v154 = vadd.s32 %v153, %v151
      %v155 = vadd.s32 %v153, %v152
      %v156 = vadd.s32 %v154, %v150
      %v157 = vadd.s32 %v155, %v150
      %vm158 = vcmp.lt.s32.totalorder %v156, 2048
      %vm159 = vcmp.lt.s32.totalorder %v157, 2048
      %v160 = vmul.f32 %v73, %v60
      %v161 = vmul.f32 %v75, %v61
      %v162 = vsel %vm158, %v160, 0.0
      %v163 = vsel %vm159, %v161, 0.0
      %v164 = vsel %vm158, %v73, 0.0
      %v165 = vsel %vm159, %v75, 0.0
      %v166 = vsel %vm158, %v60, 0.0
      %v167 = vsel %vm159, %v61, 0.0
      %v168 = vsel %vm158, %v112, 0.0
      %v169 = vsel %vm159, %v113, 0.0
      %v170 = vld [vmem:[#allocation2] sm:$0xff]
      %v171 = vadd.f32 %v162, %v163
      %v172 = vadd.f32 %v170, %v171
      %173 = vst [vmem:[#allocation2] sm:$0xff] %v172
      %s174 = scalar_lea.vmem [#allocation2], 8
      %v175 = vld [vmem:[%s174] sm:$0xff]
      %v176 = vadd.f32 %v164, %v165
      %v177 = vadd.f32 %v175, %v176
      %178 = vst [vmem:[%s174] sm:$0xff] %v177
      %s179 = scalar_lea.vmem [#allocation2], 16
      %v180 = vld [vmem:[%s179] sm:$0xff]
      %v181 = vadd.f32 %v166, %v167
      %v182 = vadd.f32 %v180, %v181
      %183 = vst [vmem:[%s179] sm:$0xff] %v182
      %s184 = scalar_lea.vmem [#allocation2], 24
      %v185 = vld [vmem:[%s184] sm:$0xff]
      %v186 = vadd.f32 %v168, %v169
      %v187 = vadd.f32 %v185, %v186
      %188 = vst [vmem:[%s184] sm:$0xff] %v187
    $region29: #{tpu_custom_call.1} parent=1 // pred_fallthru
      _
    // Predicated region
    $region30: #{tpu_custom_call.1} parent=1 // pred_check
      %p189 = pneg %p52
    $region31: #{tpu_custom_call.1} parent=1 // pred_check_branch
      %191 = sbr.rel (%p189) target = $region33
    $region32: #{tpu_custom_call.1} parent=1 // pred_region
      %v192 = vld [vmem:[#allocation2] sm:$0xff]
      %v193 = vld [vmem:[#allocation2 + $0x8] sm:$0xff]
      %v194 = vld [vmem:[#allocation2 + $0x10] sm:$0xff]
      %v195 = vld [vmem:[#allocation2 + $0x18] sm:$0xff]
      %196 = vst [vmem:[#allocation8] sm:$0xff] %v192
      %197 = vst [vmem:[#allocation8 + $0x8] sm:$0xff] %v193
      %198 = vst [vmem:[#allocation8 + $0x10] sm:$0xff] %v194
      %199 = vst [vmem:[#allocation8 + $0x18] sm:$0xff] %v195
    $region33: #{tpu_custom_call.1} parent=1 // pred_fallthru
      _
    // Predicated region
    $region34: #{tpu_custom_call.1} parent=1 // pred_check
      _
    $region35: #{tpu_custom_call.1} parent=1 // pred_check_branch
      %201 = sbr.rel (0) target = $region37
    $region36: #{tpu_custom_call.1} parent=1 // pred_region
      %s203 = ssub.s32 512, 512
      %204 = vsyncadd [#allocation5], %s203
      %s205 = sshll.u32 [#allocation8], 4
      %s206 = int_to_ptr.vmem [resolvable:$true] %s205
      %211 = dma.vmem_to_hbm [thread:$0]  %s206, 512, %s2, [#allocation5], 128, 128, 8
    $region37: #{tpu_custom_call.1} parent=1 // pred_fallthru
      _
    // Predicated region
    $region38: #{tpu_custom_call.1} parent=1 // pred_check
      _
    $region39: #{tpu_custom_call.1} parent=1 // pred_check_branch
      %213 = sbr.rel (0) target = $region41
    $region40: #{tpu_custom_call.1} parent=1 // pred_region
      %214 = dma.done [#allocation5], 512
    $region41: #{tpu_custom_call.1} parent=1 // pred_fallthru
      _
    %215 = vsyncpa [#allocation4], 1
    %216 = vsyncpa [#allocation7], 1
    %217 = vsyncpa [#allocation5], 1

</llo_original>
